<compile_context>
chip_gen: v7x
topology: tpu7x:2x2x1
jax: 0.10.0
libtpu: 0.0.40
codegen_flags: <defaults>
</compile_context>

<pallas_src>
import functools

import jax
import jax.numpy as jnp
from jax.experimental import pallas as pl
from jax.experimental.pallas import tpu as pltpu


# ---------------------------------------------------------------------------
# Kernel 1: fused QKV projection + head split (+ softmax scale folded into Q).
# Runs ONCE over the sequence; the flash kernel just consumes its outputs.
# ---------------------------------------------------------------------------
def _qkv_proj_kernel(x_ref, wq_ref, wk_ref, wv_ref, q_ref, k_ref, v_ref, *,
                     num_heads, head_dim, scale):
    x = x_ref[...]                                            # (tn, C)

    def split_heads(y):                                       # (tn, C) -> (H, tn, hd)
        # One relayout per sequence tile (amortized over every q/kv reuse in the
        # flash loop) -- this was previously paid on every kv step.
        return jnp.stack(
            [y[:, h * head_dim:(h + 1) * head_dim] for h in range(num_heads)],
            axis=0)

    q = jnp.dot(x, wq_ref[...], preferred_element_type=jnp.float32) * scale
    k = jnp.dot(x, wk_ref[...], preferred_element_type=jnp.float32)
    v = jnp.dot(x, wv_ref[...], preferred_element_type=jnp.float32)
    q_ref[...] = split_heads(q.astype(q_ref.dtype))
    k_ref[...] = split_heads(k.astype(k_ref.dtype))
    v_ref[...] = split_heads(v.astype(v_ref.dtype))


# ---------------------------------------------------------------------------
# Kernel 2: flash attention (online softmax), one (batch, head, q-tile) per
# resident accumulator; kv axis is the innermost sequential reduction.
# ---------------------------------------------------------------------------
def _flash_attn_kernel(q_ref, k_ref, v_ref, o_ref, m_scr, l_scr, acc_scr):
    ki = pl.program_id(3)

    @pl.when(ki == 0)
    def _init():
        m_scr[...] = jnp.full(m_scr.shape, -jnp.inf, dtype=m_scr.dtype)
        l_scr[...] = jnp.zeros(l_scr.shape, dtype=l_scr.dtype)
        acc_scr[...] = jnp.zeros(acc_scr.shape, dtype=acc_scr.dtype)

    q = q_ref[...]                                            # (tq, hd), pre-scaled
    k = k_ref[...]                                            # (tk, hd)
    v = v_ref[...]                                            # (tk, hd)

    # scores: q @ k^T with f32 accumulation, lane-dense over tk
    s = jax.lax.dot_general(q, k, (((1,), (1,)), ((), ())),
                            preferred_element_type=jnp.float32)      # (tq, tk)

    m_prev = m_scr[...]
    m_new = jnp.maximum(m_prev, jnp.max(s, axis=-1, keepdims=True))  # (tq, 1)
    alpha = jnp.exp(m_prev - m_new)
    p = jnp.exp(s - m_new)                                           # (tq, tk) f32
    l_scr[...] = alpha * l_scr[...] + jnp.sum(p, axis=-1, keepdims=True)
    acc_scr[...] = alpha * acc_scr[...] + jnp.dot(
        p.astype(v.dtype), v, preferred_element_type=jnp.float32)    # (tq, hd)
    m_scr[...] = m_new

    @pl.when(ki == pl.num_programs(3) - 1)
    def _finalize():
        o_ref[...] = (acc_scr[...] / l_scr[...]).astype(o_ref.dtype)


# ---------------------------------------------------------------------------
# Kernel 3: head merge + output projection + bias (lane-dense (tn, C) store).
# ---------------------------------------------------------------------------
def _merge_proj_kernel(ctx_ref, wo_ref, bo_ref, o_ref, *, num_heads):
    ctx = ctx_ref[...]                                        # (H, tn, hd)
    merged = jnp.concatenate([ctx[h] for h in range(num_heads)], axis=-1)  # (tn, C)
    out = jnp.dot(merged, wo_ref[...], preferred_element_type=jnp.float32)
    o_ref[...] = (out + bo_ref[...]).astype(o_ref.dtype)


# ---------------------------------------------------------------------------
# Wrapper
# ---------------------------------------------------------------------------
def _pick_tile(n, preferred=(512, 256, 128)):
    for t in preferred:
        if n >= t and n % t == 0:
            return t
    return n  # full extent (always a legal block); fine for small / odd N


def _vmem_limit_bytes():
    # Generation-aware budget: ~3/4 of physical VMEM, capped at 96 MiB.
    # v5e/v6e (128 MiB physical) -> 96 MiB; v7x (64 MiB physical) -> 48 MiB.
    try:
        cap = pltpu.get_tpu_info().vmem_capacity_bytes
    except Exception:
        cap = 64 * 1024 * 1024
    return int(min(96 * 1024 * 1024, (cap * 3) // 4))


def attention_pallas(x, w_qkv, w_proj, b_proj, *, num_heads, compute_dtype=None):
    """Multi-head self-attention matching the PyTorch module.

    x      : (B, N, C)
    w_qkv  : (C, 3C)   (transpose of nn.Linear(dim, 3*dim).weight)
    w_proj : (C, C)    (transpose of nn.Linear(dim, dim).weight)
    b_proj : (C,)

    `compute_dtype=jnp.bfloat16` (or bf16 `x`) selects the bf16 MXU fast path
    for v5e/v6e; accumulation and all softmax math stay in f32 regardless.
    """
    B, N, C = x.shape
    assert C % num_heads == 0, 'dim should be divisible by num_heads'
    head_dim = C // num_heads
    scale = head_dim ** (-0.5)

    op_dtype = jnp.dtype(compute_dtype) if compute_dtype is not None else x.dtype
    x_op = x.astype(op_dtype)
    # Split the fused QKV weight into lane-aligned (C, C) matrices in the wrapper
    # (cheap XLA slices) so no kernel ever slices at lane offsets C / 2C.
    w_q = w_qkv[:, 0 * C:1 * C].astype(op_dtype)
    w_k = w_qkv[:, 1 * C:2 * C].astype(op_dtype)
    w_v = w_qkv[:, 2 * C:3 * C].astype(op_dtype)
    w_o = w_proj.astype(op_dtype)
    b_o = b_proj.astype(jnp.float32).reshape(1, C)

    vmem_limit = _vmem_limit_bytes()
    tn = _pick_tile(N)   # projection / merge sequence tile
    tq = _pick_tile(N)   # flash q tile
    tk = _pick_tile(N)   # flash kv tile

    # ---- step 1: QKV projection + head split + Q scaling (once per token) ----
    qkv_shape = jax.ShapeDtypeStruct((B, num_heads, N, head_dim), op_dtype)
    qkv_kernel = functools.partial(
        _qkv_proj_kernel, num_heads=num_heads, head_dim=head_dim, scale=scale)
    hsplit_spec = pl.BlockSpec((None, num_heads, tn, head_dim),
                               lambda b, i: (b, 0, i, 0))
    q, k, v = pl.pallas_call(
        qkv_kernel,
        out_shape=(qkv_shape, qkv_shape, qkv_shape),
        grid_spec=pltpu.PrefetchScalarGridSpec(
            num_scalar_prefetch=0,
            grid=(B, N // tn),
            in_specs=[
                pl.BlockSpec((None, tn, C), lambda b, i: (b, i, 0)),   # x tile
                pl.BlockSpec((C, C), lambda b, i: (0, 0)),             # W_q (resident)
                pl.BlockSpec((C, C), lambda b, i: (0, 0)),             # W_k
                pl.BlockSpec((C, C), lambda b, i: (0, 0)),             # W_v
            ],
            out_specs=(hsplit_spec, hsplit_spec, hsplit_spec),
        ),
        compiler_params=pltpu.CompilerParams(
            dimension_semantics=("parallel", "parallel"),
            vmem_limit_bytes=vmem_limit,
        ),
    )(x_op, w_q, w_k, w_v)

    # ---- step 2: flash attention over (batch, head, q-tile, kv-tile) ---------
    # B * H * (N/tq) parallel work units -> both TensorCores on v7x stay busy.
    ctx = pl.pallas_call(
        _flash_attn_kernel,
        out_shape=jax.ShapeDtypeStruct((B, num_heads, N, head_dim), op_dtype),
        grid_spec=pltpu.PrefetchScalarGridSpec(
            num_scalar_prefetch=0,
            grid=(B, num_heads, N // tq, N // tk),
            in_specs=[
                pl.BlockSpec((None, None, tq, head_dim),
                             lambda b, h, qi, ki: (b, h, qi, 0)),      # Q (resident over ki)
                pl.BlockSpec((None, None, tk, head_dim),
                             lambda b, h, qi, ki: (b, h, ki, 0)),      # K
                pl.BlockSpec((None, None, tk, head_dim),
                             lambda b, h, qi, ki: (b, h, ki, 0)),      # V
            ],
            out_specs=pl.BlockSpec((None, None, tq, head_dim),
                                   lambda b, h, qi, ki: (b, h, qi, 0)),
            scratch_shapes=[
                pltpu.VMEM((tq, 1), jnp.float32),          # running max
                pltpu.VMEM((tq, 1), jnp.float32),          # running denominator
                pltpu.VMEM((tq, head_dim), jnp.float32),   # PV accumulator
            ],
        ),
        compiler_params=pltpu.CompilerParams(
            dimension_semantics=("parallel", "parallel", "parallel", "arbitrary"),
            vmem_limit_bytes=vmem_limit,
        ),
    )(q, k, v)

    # ---- step 3: head merge + output projection + bias -----------------------
    merge_kernel = functools.partial(_merge_proj_kernel, num_heads=num_heads)
    out = pl.pallas_call(
        merge_kernel,
        out_shape=jax.ShapeDtypeStruct((B, N, C), x.dtype),
        grid_spec=pltpu.PrefetchScalarGridSpec(
            num_scalar_prefetch=0,
            grid=(B, N // tn),
            in_specs=[
                pl.BlockSpec((None, num_heads, tn, head_dim),
                             lambda b, i: (b, 0, i, 0)),               # context
                pl.BlockSpec((C, C), lambda b, i: (0, 0)),             # W_proj
                pl.BlockSpec((1, C), lambda b, i: (0, 0)),             # b_proj
            ],
            out_specs=pl.BlockSpec((None, tn, C), lambda b, i: (b, i, 0)),
        ),
        compiler_params=pltpu.CompilerParams(
            dimension_semantics=("parallel", "parallel"),
            vmem_limit_bytes=vmem_limit,
        ),
    )(ctx, w_o, b_o)
    return out


# ---------------------------------------------------------------------------
# Pure-JAX f32 reference mirroring the PyTorch forward
# ---------------------------------------------------------------------------
def attention_reference(x, w_qkv, w_proj, b_proj, *, num_heads):
    B, N, C = x.shape
    head_dim = C // num_heads
    scale = head_dim ** (-0.5)

    qkv = x @ w_qkv                                               # (B, N, 3C)
    qkv = qkv.reshape(B, N, 3, num_heads, head_dim)
    qkv = jnp.transpose(qkv, (2, 0, 3, 1, 4))                     # (3, B, H, N, hd)
    q, k, v = qkv[0], qkv[1], qkv[2]
    attn = jnp.einsum('bhqd,bhkd->bhqk', q, k) * scale
    attn = jax.nn.softmax(attn, axis=-1)
    out = jnp.einsum('bhqk,bhkd->bhqd', attn, v)                  # (B, H, N, hd)
    out = jnp.transpose(out, (0, 2, 1, 3)).reshape(B, N, C)
    return out @ w_proj + b_proj


if __name__ == "__main__":
    num_heads = 8

    def make_inputs(key, B, N, C):
        kx, kqkv, kp, kb = jax.random.split(key, 4)
        x = jax.random.normal(kx, (B, N, C), dtype=jnp.float32)
        w_qkv = jax.random.normal(kqkv, (C, 3 * C), dtype=jnp.float32) * 0.05
        w_proj = jax.random.normal(kp, (C, C), dtype=jnp.float32) * 0.05
        b_proj = jax.random.normal(kb, (C,), dtype=jnp.float32) * 0.05
        return x, w_qkv, w_proj, b_proj

    key = jax.random.PRNGKey(0)
    k1, k2 = jax.random.split(key)

    # --- test 1: module-consistent small shape (dim=32, heads=8, seq=8, batch=2)
    x, w_qkv, w_proj, b_proj = make_inputs(k1, 2, 8, 32)
    out = jax.block_until_ready(
        attention_pallas(x, w_qkv, w_proj, b_proj, num_heads=num_heads))
    ref = attention_reference(x, w_qkv, w_proj, b_proj, num_heads=num_heads)
    assert out.shape == ref.shape
    assert jnp.allclose(out, ref, atol=1e-4, rtol=1e-4), "f32 small-shape mismatch"

    # --- test 2: longer sequence exercises the multi-step online-softmax path
    #             (flash grid = (B, H, 2 q-tiles, 2 kv-tiles) with 512 tiles) ---
    x2, w_qkv2, w_proj2, b_proj2 = make_inputs(k2, 2, 1024, 64)
    out2 = jax.block_until_ready(
        attention_pallas(x2, w_qkv2, w_proj2, b_proj2, num_heads=num_heads))
    ref2 = attention_reference(x2, w_qkv2, w_proj2, b_proj2, num_heads=num_heads)
    assert jnp.allclose(out2, ref2, atol=1e-4, rtol=1e-4), "f32 tiled mismatch"

    # --- test 3: bf16 operands (v5e/v6e MXU fast path), f32 accumulation ---
    out_bf16 = jax.block_until_ready(
        attention_pallas(x.astype(jnp.bfloat16), w_qkv, w_proj, b_proj,
                         num_heads=num_heads))
    assert out_bf16.dtype == jnp.bfloat16
    assert jnp.allclose(out_bf16.astype(jnp.float32), ref, atol=1e-1, rtol=1e-1), \
        "bf16 mismatch"

    print("KERNEL_OK")
</pallas_src>

<mosaic_0001>
module attributes {stable_mosaic.version = 11 : i64} {
  func.func @_qkv_proj_kernel(%arg0: i32, %arg1: i32, %arg2: memref<1x8x32xf32, #tpu.memory_space<vmem>>, %arg3: memref<32x32xf32, #tpu.memory_space<vmem>>, %arg4: memref<32x32xf32, #tpu.memory_space<vmem>>, %arg5: memref<32x32xf32, #tpu.memory_space<vmem>>, %arg6: memref<1x8x8x4xf32, #tpu.memory_space<vmem>>, %arg7: memref<1x8x8x4xf32, #tpu.memory_space<vmem>>, %arg8: memref<1x8x8x4xf32, #tpu.memory_space<vmem>>) attributes {dimension_semantics = [#tpu.dimension_semantics<parallel>, #tpu.dimension_semantics<parallel>], iteration_bounds = array<i64: 2, 1>, scalar_prefetch = 0 : i64, scratch_operands = 0 : i64, tpu.core_type = #tpu.core_type<tc>, window_params = [{transform_indices = @transform_0, window_bounds = array<i64: 1, 8, 32>}, {pipeline_mode = #tpu.pipeline_mode<synchronous>, transform_indices = @transform_1, window_bounds = array<i64: 32, 32>}, {pipeline_mode = #tpu.pipeline_mode<synchronous>, transform_indices = @transform_2, window_bounds = array<i64: 32, 32>}, {pipeline_mode = #tpu.pipeline_mode<synchronous>, transform_indices = @transform_3, window_bounds = array<i64: 32, 32>}, {transform_indices = @transform_4, window_bounds = array<i64: 1, 8, 8, 4>}, {transform_indices = @transform_5, window_bounds = array<i64: 1, 8, 8, 4>}, {transform_indices = @transform_6, window_bounds = array<i64: 1, 8, 8, 4>}]} {
    %c0 = arith.constant 0 : index
    %c0_0 = arith.constant 0 : index
    %c0_1 = arith.constant 0 : index
    %0 = vector.load %arg2[%c0, %c0_0, %c0_1] : memref<1x8x32xf32, #tpu.memory_space<vmem>>, vector<1x8x32xf32>
    %1 = vector.shape_cast %0 : vector<1x8x32xf32> to vector<8x32xf32>
    %c0_2 = arith.constant 0 : index
    %c0_3 = arith.constant 0 : index
    %2 = vector.load %arg3[%c0_2, %c0_3] : memref<32x32xf32, #tpu.memory_space<vmem>>, vector<32x32xf32>
    %cst = arith.constant dense<0.000000e+00> : vector<8x32xf32>
    %3 = tpu.matmul %1, %2, %cst {dimension_numbers = #tpu.dot_dimension_numbers<[1], [0], [0], [1], [0, 0, 1, 1], [], []>} : vector<8x32xf32>, vector<32x32xf32>, vector<8x32xf32> -> vector<8x32xf32>
    %cst_4 = arith.constant 5.000000e-01 : f32
    %4 = vector.broadcast %cst_4 : f32 to vector<8x32xf32>
    %5 = arith.mulf %3, %4 : vector<8x32xf32>
    %c0_5 = arith.constant 0 : index
    %c0_6 = arith.constant 0 : index
    %6 = vector.load %arg4[%c0_5, %c0_6] : memref<32x32xf32, #tpu.memory_space<vmem>>, vector<32x32xf32>
    %cst_7 = arith.constant dense<0.000000e+00> : vector<8x32xf32>
    %7 = tpu.matmul %1, %6, %cst_7 {dimension_numbers = #tpu.dot_dimension_numbers<[1], [0], [0], [1], [0, 0, 1, 1], [], []>} : vector<8x32xf32>, vector<32x32xf32>, vector<8x32xf32> -> vector<8x32xf32>
    %c0_8 = arith.constant 0 : index
    %c0_9 = arith.constant 0 : index
    %8 = vector.load %arg5[%c0_8, %c0_9] : memref<32x32xf32, #tpu.memory_space<vmem>>, vector<32x32xf32>
    %cst_10 = arith.constant dense<0.000000e+00> : vector<8x32xf32>
    %9 = tpu.matmul %1, %8, %cst_10 {dimension_numbers = #tpu.dot_dimension_numbers<[1], [0], [0], [1], [0, 0, 1, 1], [], []>} : vector<8x32xf32>, vector<32x32xf32>, vector<8x32xf32> -> vector<8x32xf32>
    %10 = vector.extract_strided_slice %5 {offsets = [0, 0], sizes = [8, 4], strides = [1, 1]} : vector<8x32xf32> to vector<8x4xf32>
    %11 = vector.extract_strided_slice %5 {offsets = [0, 4], sizes = [8, 4], strides = [1, 1]} : vector<8x32xf32> to vector<8x4xf32>
    %12 = vector.extract_strided_slice %5 {offsets = [0, 8], sizes = [8, 4], strides = [1, 1]} : vector<8x32xf32> to vector<8x4xf32>
    %13 = vector.extract_strided_slice %5 {offsets = [0, 12], sizes = [8, 4], strides = [1, 1]} : vector<8x32xf32> to vector<8x4xf32>
    %14 = vector.extract_strided_slice %5 {offsets = [0, 16], sizes = [8, 4], strides = [1, 1]} : vector<8x32xf32> to vector<8x4xf32>
    %15 = vector.extract_strided_slice %5 {offsets = [0, 20], sizes = [8, 4], strides = [1, 1]} : vector<8x32xf32> to vector<8x4xf32>
    %16 = vector.extract_strided_slice %5 {offsets = [0, 24], sizes = [8, 4], strides = [1, 1]} : vector<8x32xf32> to vector<8x4xf32>
    %17 = vector.extract_strided_slice %5 {offsets = [0, 28], sizes = [8, 4], strides = [1, 1]} : vector<8x32xf32> to vector<8x4xf32>
    %18 = vector.shape_cast %10 : vector<8x4xf32> to vector<1x8x4xf32>
    %19 = vector.shape_cast %11 : vector<8x4xf32> to vector<1x8x4xf32>
    %20 = vector.shape_cast %12 : vector<8x4xf32> to vector<1x8x4xf32>
    %21 = vector.shape_cast %13 : vector<8x4xf32> to vector<1x8x4xf32>
    %22 = vector.shape_cast %14 : vector<8x4xf32> to vector<1x8x4xf32>
    %23 = vector.shape_cast %15 : vector<8x4xf32> to vector<1x8x4xf32>
    %24 = vector.shape_cast %16 : vector<8x4xf32> to vector<1x8x4xf32>
    %25 = vector.shape_cast %17 : vector<8x4xf32> to vector<1x8x4xf32>
    %26 = tpu.concatenate %18, %19, %20, %21, %22, %23, %24, %25 in 0 : vector<1x8x4xf32>, vector<1x8x4xf32>, vector<1x8x4xf32>, vector<1x8x4xf32>, vector<1x8x4xf32>, vector<1x8x4xf32>, vector<1x8x4xf32>, vector<1x8x4xf32> -> vector<8x8x4xf32>
    %c0_11 = arith.constant 0 : index
    %c0_12 = arith.constant 0 : index
    %c0_13 = arith.constant 0 : index
    %c0_14 = arith.constant 0 : index
    %27 = vector.load %arg6[%c0_11, %c0_12, %c0_13, %c0_14] : memref<1x8x8x4xf32, #tpu.memory_space<vmem>>, vector<1x8x8x4xf32>
    %28 = vector.shape_cast %27 : vector<1x8x8x4xf32> to vector<8x8x4xf32>
    %29 = vector.shape_cast %26 : vector<8x8x4xf32> to vector<1x8x8x4xf32>
    tpu.vector_store %arg6[%c0_11, %c0_12, %c0_13, %c0_14], %29 {strides = array<i32>} : memref<1x8x8x4xf32, #tpu.memory_space<vmem>>, vector<1x8x8x4xf32>,
    %30 = vector.extract_strided_slice %7 {offsets = [0, 0], sizes = [8, 4], strides = [1, 1]} : vector<8x32xf32> to vector<8x4xf32>
    %31 = vector.extract_strided_slice %7 {offsets = [0, 4], sizes = [8, 4], strides = [1, 1]} : vector<8x32xf32> to vector<8x4xf32>
    %32 = vector.extract_strided_slice %7 {offsets = [0, 8], sizes = [8, 4], strides = [1, 1]} : vector<8x32xf32> to vector<8x4xf32>
    %33 = vector.extract_strided_slice %7 {offsets = [0, 12], sizes = [8, 4], strides = [1, 1]} : vector<8x32xf32> to vector<8x4xf32>
    %34 = vector.extract_strided_slice %7 {offsets = [0, 16], sizes = [8, 4], strides = [1, 1]} : vector<8x32xf32> to vector<8x4xf32>
    %35 = vector.extract_strided_slice %7 {offsets = [0, 20], sizes = [8, 4], strides = [1, 1]} : vector<8x32xf32> to vector<8x4xf32>
    %36 = vector.extract_strided_slice %7 {offsets = [0, 24], sizes = [8, 4], strides = [1, 1]} : vector<8x32xf32> to vector<8x4xf32>
    %37 = vector.extract_strided_slice %7 {offsets = [0, 28], sizes = [8, 4], strides = [1, 1]} : vector<8x32xf32> to vector<8x4xf32>
    %38 = vector.shape_cast %30 : vector<8x4xf32> to vector<1x8x4xf32>
    %39 = vector.shape_cast %31 : vector<8x4xf32> to vector<1x8x4xf32>
    %40 = vector.shape_cast %32 : vector<8x4xf32> to vector<1x8x4xf32>
    %41 = vector.shape_cast %33 : vector<8x4xf32> to vector<1x8x4xf32>
    %42 = vector.shape_cast %34 : vector<8x4xf32> to vector<1x8x4xf32>
    %43 = vector.shape_cast %35 : vector<8x4xf32> to vector<1x8x4xf32>
    %44 = vector.shape_cast %36 : vector<8x4xf32> to vector<1x8x4xf32>
    %45 = vector.shape_cast %37 : vector<8x4xf32> to vector<1x8x4xf32>
    %46 = tpu.concatenate %38, %39, %40, %41, %42, %43, %44, %45 in 0 : vector<1x8x4xf32>, vector<1x8x4xf32>, vector<1x8x4xf32>, vector<1x8x4xf32>, vector<1x8x4xf32>, vector<1x8x4xf32>, vector<1x8x4xf32>, vector<1x8x4xf32> -> vector<8x8x4xf32>
    %c0_15 = arith.constant 0 : index
    %c0_16 = arith.constant 0 : index
    %c0_17 = arith.constant 0 : index
    %c0_18 = arith.constant 0 : index
    %47 = vector.load %arg7[%c0_15, %c0_16, %c0_17, %c0_18] : memref<1x8x8x4xf32, #tpu.memory_space<vmem>>, vector<1x8x8x4xf32>
    %48 = vector.shape_cast %47 : vector<1x8x8x4xf32> to vector<8x8x4xf32>
    %49 = vector.shape_cast %46 : vector<8x8x4xf32> to vector<1x8x8x4xf32>
    tpu.vector_store %arg7[%c0_15, %c0_16, %c0_17, %c0_18], %49 {strides = array<i32>} : memref<1x8x8x4xf32, #tpu.memory_space<vmem>>, vector<1x8x8x4xf32>,
    %50 = vector.extract_strided_slice %9 {offsets = [0, 0], sizes = [8, 4], strides = [1, 1]} : vector<8x32xf32> to vector<8x4xf32>
    %51 = vector.extract_strided_slice %9 {offsets = [0, 4], sizes = [8, 4], strides = [1, 1]} : vector<8x32xf32> to vector<8x4xf32>
    %52 = vector.extract_strided_slice %9 {offsets = [0, 8], sizes = [8, 4], strides = [1, 1]} : vector<8x32xf32> to vector<8x4xf32>
    %53 = vector.extract_strided_slice %9 {offsets = [0, 12], sizes = [8, 4], strides = [1, 1]} : vector<8x32xf32> to vector<8x4xf32>
    %54 = vector.extract_strided_slice %9 {offsets = [0, 16], sizes = [8, 4], strides = [1, 1]} : vector<8x32xf32> to vector<8x4xf32>
    %55 = vector.extract_strided_slice %9 {offsets = [0, 20], sizes = [8, 4], strides = [1, 1]} : vector<8x32xf32> to vector<8x4xf32>
    %56 = vector.extract_strided_slice %9 {offsets = [0, 24], sizes = [8, 4], strides = [1, 1]} : vector<8x32xf32> to vector<8x4xf32>
    %57 = vector.extract_strided_slice %9 {offsets = [0, 28], sizes = [8, 4], strides = [1, 1]} : vector<8x32xf32> to vector<8x4xf32>
    %58 = vector.shape_cast %50 : vector<8x4xf32> to vector<1x8x4xf32>
    %59 = vector.shape_cast %51 : vector<8x4xf32> to vector<1x8x4xf32>
    %60 = vector.shape_cast %52 : vector<8x4xf32> to vector<1x8x4xf32>
    %61 = vector.shape_cast %53 : vector<8x4xf32> to vector<1x8x4xf32>
    %62 = vector.shape_cast %54 : vector<8x4xf32> to vector<1x8x4xf32>
    %63 = vector.shape_cast %55 : vector<8x4xf32> to vector<1x8x4xf32>
    %64 = vector.shape_cast %56 : vector<8x4xf32> to vector<1x8x4xf32>
    %65 = vector.shape_cast %57 : vector<8x4xf32> to vector<1x8x4xf32>
    %66 = tpu.concatenate %58, %59, %60, %61, %62, %63, %64, %65 in 0 : vector<1x8x4xf32>, vector<1x8x4xf32>, vector<1x8x4xf32>, vector<1x8x4xf32>, vector<1x8x4xf32>, vector<1x8x4xf32>, vector<1x8x4xf32>, vector<1x8x4xf32> -> vector<8x8x4xf32>
    %c0_19 = arith.constant 0 : index
    %c0_20 = arith.constant 0 : index
    %c0_21 = arith.constant 0 : index
    %c0_22 = arith.constant 0 : index
    %67 = vector.load %arg8[%c0_19, %c0_20, %c0_21, %c0_22] : memref<1x8x8x4xf32, #tpu.memory_space<vmem>>, vector<1x8x8x4xf32>
    %68 = vector.shape_cast %67 : vector<1x8x8x4xf32> to vector<8x8x4xf32>
    %69 = vector.shape_cast %66 : vector<8x8x4xf32> to vector<1x8x8x4xf32>
    tpu.vector_store %arg8[%c0_19, %c0_20, %c0_21, %c0_22], %69 {strides = array<i32>} : memref<1x8x8x4xf32, #tpu.memory_space<vmem>>, vector<1x8x8x4xf32>,
    return
  }
  func.func @transform_0(%arg0: i32, %arg1: i32) -> (i32, i32, i32) {
    %c0_i32 = arith.constant 0 : i32
    %c0_i32_0 = arith.constant 0 : i32
    return %arg0, %arg1, %c0_i32 : i32, i32, i32
  }
  func.func @transform_1(%arg0: i32, %arg1: i32) -> (i32, i32) {
    %c0_i32 = arith.constant 0 : i32
    %c0_i32_0 = arith.constant 0 : i32
    %c0_i32_1 = arith.constant 0 : i32
    return %c0_i32, %c0_i32_0 : i32, i32
  }
  func.func @transform_2(%arg0: i32, %arg1: i32) -> (i32, i32) {
    %c0_i32 = arith.constant 0 : i32
    %c0_i32_0 = arith.constant 0 : i32
    %c0_i32_1 = arith.constant 0 : i32
    return %c0_i32, %c0_i32_0 : i32, i32
  }
  func.func @transform_3(%arg0: i32, %arg1: i32) -> (i32, i32) {
    %c0_i32 = arith.constant 0 : i32
    %c0_i32_0 = arith.constant 0 : i32
    %c0_i32_1 = arith.constant 0 : i32
    return %c0_i32, %c0_i32_0 : i32, i32
  }
  func.func @transform_4(%arg0: i32, %arg1: i32) -> (i32, i32, i32, i32) {
    %c0_i32 = arith.constant 0 : i32
    %c0_i32_0 = arith.constant 0 : i32
    %c0_i32_1 = arith.constant 0 : i32
    return %arg0, %c0_i32, %arg1, %c0_i32_0 : i32, i32, i32, i32
  }
  func.func @transform_5(%arg0: i32, %arg1: i32) -> (i32, i32, i32, i32) {
    %c0_i32 = arith.constant 0 : i32
    %c0_i32_0 = arith.constant 0 : i32
    %c0_i32_1 = arith.constant 0 : i32
    return %arg0, %c0_i32, %arg1, %c0_i32_0 : i32, i32, i32, i32
  }
  func.func @transform_6(%arg0: i32, %arg1: i32) -> (i32, i32, i32, i32) {
    %c0_i32 = arith.constant 0 : i32
    %c0_i32_0 = arith.constant 0 : i32
    %c0_i32_1 = arith.constant 0 : i32
    return %arg0, %c0_i32, %arg1, %c0_i32_0 : i32, i32, i32, i32
  }
}

</mosaic_0001>

<llo_original>
// kernel: tpu_custom_call.1
$region0: #{tpu_custom_call.1}
  #allocation0 [shape = 'u32[]', space=smem, size = 0x4, offset = 0x4, fixed_abs, tag = 'smem constant byte address 0x4 - core index']
  #allocation1 [shape = 'u32[144,128]{1,0:T(1,128)}', space=vmem, size = 0x12000, scoped, tag = 'internal scratch']
  %s0 = inlined_call_operand.hbm [shape: f32[2,8,32], index: 0, kind: input, shape index: {}]
  %s1 = inlined_call_operand.hbm [shape: f32[32,32], index: 1, kind: input, shape index: {}]
  %s2 = inlined_call_operand.hbm [shape: f32[32,32], index: 2, kind: input, shape index: {}]
  %s3 = inlined_call_operand.hbm [shape: f32[32,32], index: 3, kind: input, shape index: {}]
  %s4 = inlined_call_operand.vmem [shape: f32[2,8,8,4], index: 4, kind: output, shape index: {0}]
  %s5 = inlined_call_operand.vmem [shape: f32[2,8,8,4], index: 5, kind: output, shape index: {1}]
  %s6 = inlined_call_operand.vmem [shape: f32[2,8,8,4], index: 6, kind: output, shape index: {2}]
  %7 = xla_tuple %s4, %s5, %s6
  %s8 = sld [smem:[#allocation0]]
  $region81: #{tpu_custom_call.1} parent=0
    _
  %s10 = ssub.s32 1, %s8
  %s11 = scalar_select 0, %s10, %s8
  $region1: #{tpu_custom_call.1} parent=0
    #allocation2 [shape = 'u8[8192]{0}', space=vmem, size = 0x2000, scoped, tag = 'input window, operand 0']
    #allocation3 [shape = 's32[2]{0}', space=sflag, size = 0x8, scoped, tag = 'scoped memory for tpu_custom_call.1']
    #allocation4 [shape = 'u8[16384]{0}', space=vmem, size = 0x4000, scoped, tag = 'input window, operand 1, single buffered']
    #allocation5 [shape = 's32[1]{0}', space=sflag, size = 0x4, scoped, tag = 'scoped memory for tpu_custom_call.1']
    #allocation6 [shape = 'u8[16384]{0}', space=vmem, size = 0x4000, scoped, tag = 'input window, operand 2, single buffered']
    #allocation7 [shape = 'u8[16384]{0}', space=vmem, size = 0x4000, scoped, tag = 'input window, operand 3, single buffered']
    #allocation8 [shape = 's32[1]{0}', space=sflag, size = 0x4, scoped, tag = 'scoped memory for tpu_custom_call.1']
    %12 = vsyncpa [#allocation3], 0
    %s13 = scalar_lea.sflag [#allocation3], 1
    %14 = vsyncpa %s13, 0
    %15 = vsyncpa [#allocation5], 0
    %16 = vsyncpa [#allocation8], 0
    loop: start=0, step=1, limit=4
    $region2: #{tpu_custom_call.1} parent=1 // loop_pre_header
      _
    $region3: #{tpu_custom_call.1} parent=1 // loop_header
      %s18 = sphi 0, %s22
      %p19 = scmp.ge.s32.totalorder %s18, 4
      %s25 = sphi 0, %s37
      %s26 = sphi 0, %s33
      %s27 = sphi 0, %s25
      %s28 = sphi 0, %s26
      %s29 = sphi 0, %s27
      %s30 = sphi 0, %s28
      %s42 = sphi 0, %s44
      %s45 = sphi 0, %s42
      %s46 = sphi 0, %s45
      %s62 = sphi 0, %s46
      %s66 = sphi 0, %s66
      %s68 = sphi 0, %s66
      %s69 = sphi 0, %s68
      %s83 = sphi 0, %s69
      %s87 = sphi 0, %s87
      %s89 = sphi 0, %s87
      %s90 = sphi 0, %s89
      %s104 = sphi 0, %s90
      %s108 = sphi 0, %s108
      %s110 = sphi 0, %s108
      %s111 = sphi 0, %s110
      %s125 = sphi 0, %s111
      %s133 = sphi 0, %s135
      %s136 = sphi 0, %s133
      %s137 = sphi 0, %s136
      %s153 = sphi 0, %s137
      %s161 = sphi 0, %s163
      %s164 = sphi 0, %s161
      %s165 = sphi 0, %s164
      %s181 = sphi 0, %s165
      %s189 = sphi 0, %s191
      %s192 = sphi 0, %s189
      %s193 = sphi 0, %s192
      %s209 = sphi 0, %s193
    $region4: #{tpu_custom_call.1} parent=1 // loop_header_branch
      %21 = sbr.rel (%p19) target = $region8
    $region5: #{tpu_custom_call.1} parent=1 // loop_body
      %s23 = ssub.s32 %s18, 1
      %s24 = ssub.s32 %s18, 2
      %s31 = sadd.s32 1, %s26
      %p32 = scmp.ge.s32.totalorder %s31, 1
      %s33 = scalar_select %p32, 0, %s31
      %s34 = sadd.s32 1, %s25
      %s35 = scalar_select %p32, %s34, %s25
      %p36 = scmp.ge.s32.totalorder %s35, 2
      %s37 = scalar_select %p36, 0, %s35
      %s38 = ssub.s32 %s25, %s37
      %s39 = ssub.s32 %s26, %s33
      %s40 = sor.u32 %s38, %s39
      %p41 = scmp.eq.s32.totalorder %s40, 0
      %s43 = sadd.s32 %s42, 1
      %s44 = scalar_select %p41, %s42, %s43
      %p47 = pneg %p41
      %p48 = scmp.eq.s32.totalorder %s18, 1
      %p49 = por %p47, %p48
      %p50 = scmp.ne.s32.totalorder %s42, %s45
      %p51 = scmp.eq.s32.totalorder %s18, 0
      %p52 = por %p50, %p51
      %p53 = scmp.ne.s32.totalorder %s42, %s45
      %p54 = scmp.eq.s32.totalorder %s23, 1
      %p55 = por %p53, %p54
      %p56 = scmp.ne.s32.totalorder %s45, %s46
      %p57 = scmp.eq.s32.totalorder %s23, 0
      %p58 = por %p56, %p57
      %p59 = scmp.ne.s32.totalorder %s45, %s46
      %p60 = scmp.eq.s32.totalorder %s24, 1
      %p61 = por %p59, %p60
      %p63 = scmp.ne.s32.totalorder %s46, %s62
      %p64 = scmp.eq.s32.totalorder %s24, 0
      %p65 = por %p63, %p64
      %s67 = sadd.s32 %s66, 1
      %p70 = scmp.eq.s32.totalorder %s18, 1
      %p71 = scmp.ne.s32.totalorder %s66, %s68
      %p72 = scmp.eq.s32.totalorder %s18, 0
      %p73 = por %p71, %p72
      %p74 = scmp.ne.s32.totalorder %s66, %s68
      %p75 = scmp.eq.s32.totalorder %s23, 1
      %p76 = por %p74, %p75
      %p77 = scmp.ne.s32.totalorder %s68, %s69
      %p78 = scmp.eq.s32.totalorder %s23, 0
      %p79 = por %p77, %p78
      %p80 = scmp.ne.s32.totalorder %s68, %s69
      %p81 = scmp.eq.s32.totalorder %s24, 1
      %p82 = por %p80, %p81
      %p84 = scmp.ne.s32.totalorder %s69, %s83
      %p85 = scmp.eq.s32.totalorder %s24, 0
      %p86 = por %p84, %p85
      %s88 = sadd.s32 %s87, 1
      %p91 = scmp.eq.s32.totalorder %s18, 1
      %p92 = scmp.ne.s32.totalorder %s87, %s89
      %p93 = scmp.eq.s32.totalorder %s18, 0
      %p94 = por %p92, %p93
      %p95 = scmp.ne.s32.totalorder %s87, %s89
      %p96 = scmp.eq.s32.totalorder %s23, 1
      %p97 = por %p95, %p96
      %p98 = scmp.ne.s32.totalorder %s89, %s90
      %p99 = scmp.eq.s32.totalorder %s23, 0
      %p100 = por %p98, %p99
      %p101 = scmp.ne.s32.totalorder %s89, %s90
      %p102 = scmp.eq.s32.totalorder %s24, 1
      %p103 = por %p101, %p102
      %p105 = scmp.ne.s32.totalorder %s90, %s104
      %p106 = scmp.eq.s32.totalorder %s24, 0
      %p107 = por %p105, %p106
      %s109 = sadd.s32 %s108, 1
      %p112 = scmp.eq.s32.totalorder %s18, 1
      %p113 = scmp.ne.s32.totalorder %s108, %s110
      %p114 = scmp.eq.s32.totalorder %s18, 0
      %p115 = por %p113, %p114
      %p116 = scmp.ne.s32.totalorder %s108, %s110
      %p117 = scmp.eq.s32.totalorder %s23, 1
      %p118 = por %p116, %p117
      %p119 = scmp.ne.s32.totalorder %s110, %s111
      %p120 = scmp.eq.s32.totalorder %s23, 0
      %p121 = por %p119, %p120
      %p122 = scmp.ne.s32.totalorder %s110, %s111
      %p123 = scmp.eq.s32.totalorder %s24, 1
      %p124 = por %p122, %p123
      %p126 = scmp.ne.s32.totalorder %s111, %s125
      %p127 = scmp.eq.s32.totalorder %s24, 0
      %p128 = por %p126, %p127
      %s129 = ssub.s32 %s25, %s37
      %s130 = ssub.s32 %s26, %s33
      %s131 = sor.u32 %s129, %s130
      %p132 = scmp.eq.s32.totalorder %s131, 0
      %s134 = sadd.s32 %s133, 1
      %s135 = scalar_select %p132, %s133, %s134
      %p138 = pneg %p132
      %p139 = scmp.eq.s32.totalorder %s18, 1
      %p140 = por %p138, %p139
      %p141 = scmp.ne.s32.totalorder %s133, %s136
      %p142 = scmp.eq.s32.totalorder %s18, 0
      %p143 = por %p141, %p142
      %p144 = scmp.ne.s32.totalorder %s133, %s136
      %p145 = scmp.eq.s32.totalorder %s23, 1
      %p146 = por %p144, %p145
      %p147 = scmp.ne.s32.totalorder %s136, %s137
      %p148 = scmp.eq.s32.totalorder %s23, 0
      %p149 = por %p147, %p148
      %p150 = scmp.ne.s32.totalorder %s136, %s137
      %p151 = scmp.eq.s32.totalorder %s24, 1
      %p152 = por %p150, %p151
      %p154 = scmp.ne.s32.totalorder %s137, %s153
      %p155 = scmp.eq.s32.totalorder %s24, 0
      %p156 = por %p154, %p155
      %s157 = ssub.s32 %s25, %s37
      %s158 = ssub.s32 %s26, %s33
      %s159 = sor.u32 %s157, %s158
      %p160 = scmp.eq.s32.totalorder %s159, 0
      %s162 = sadd.s32 %s161, 1
      %s163 = scalar_select %p160, %s161, %s162
      %p166 = pneg %p160
      %p167 = scmp.eq.s32.totalorder %s18, 1
      %p168 = por %p166, %p167
      %p169 = scmp.ne.s32.totalorder %s161, %s164
      %p170 = scmp.eq.s32.totalorder %s18, 0
      %p171 = por %p169, %p170
      %p172 = scmp.ne.s32.totalorder %s161, %s164
      %p173 = scmp.eq.s32.totalorder %s23, 1
      %p174 = por %p172, %p173
      %p175 = scmp.ne.s32.totalorder %s164, %s165
      %p176 = scmp.eq.s32.totalorder %s23, 0
      %p177 = por %p175, %p176
      %p178 = scmp.ne.s32.totalorder %s164, %s165
      %p179 = scmp.eq.s32.totalorder %s24, 1
      %p180 = por %p178, %p179
      %p182 = scmp.ne.s32.totalorder %s165, %s181
      %p183 = scmp.eq.s32.totalorder %s24, 0
      %p184 = por %p182, %p183
      %s185 = ssub.s32 %s25, %s37
      %s186 = ssub.s32 %s26, %s33
      %s187 = sor.u32 %s185, %s186
      %p188 = scmp.eq.s32.totalorder %s187, 0
      %s190 = sadd.s32 %s189, 1
      %s191 = scalar_select %p188, %s189, %s190
      %p194 = pneg %p188
      %p195 = scmp.eq.s32.totalorder %s18, 1
      %p196 = por %p194, %p195
      %p197 = scmp.ne.s32.totalorder %s189, %s192
      %p198 = scmp.eq.s32.totalorder %s18, 0
      %p199 = por %p197, %p198
      %p200 = scmp.ne.s32.totalorder %s189, %s192
      %p201 = scmp.eq.s32.totalorder %s23, 1
      %p202 = por %p200, %p201
      %p203 = scmp.ne.s32.totalorder %s192, %s193
      %p204 = scmp.eq.s32.totalorder %s23, 0
      %p205 = por %p203, %p204
      %p206 = scmp.ne.s32.totalorder %s192, %s193
      %p207 = scmp.eq.s32.totalorder %s24, 1
      %p208 = por %p206, %p207
      %p210 = scmp.ne.s32.totalorder %s193, %s209
      %p211 = scmp.eq.s32.totalorder %s24, 0
      %p212 = por %p210, %p211
      %p213 = scmp.le.s32.totalorder 1, %s18
      %p214 = scmp.lt.s32.totalorder %s18, 3
      %p215 = pnand %p213, %p214
      %p216 = pneg %p215
      // Predicated region
      $region9: #{tpu_custom_call.1} parent=5 // pred_check
        _
      $region10: #{tpu_custom_call.1} parent=5 // pred_check_branch
        %218 = sbr.rel (%p215) target = $region12
      $region11: #{tpu_custom_call.1} parent=5 // pred_region
        %s219 = ssub.s32 %s18, 1
        // Predicated region
        $region13: #{tpu_custom_call.1} parent=11 // pred_check
          %p220 = pneg %p79
        $region14: #{tpu_custom_call.1} parent=11 // pred_check_branch
          %222 = sbr.rel (%p220) target = $region16
        $region15: #{tpu_custom_call.1} parent=11 // pred_region
          %s224 = ssub.s32 512, 512
          %225 = vsyncadd [#allocation5], %s224
          %s226 = sshll.u32 [#allocation4], 4
          %s227 = int_to_ptr.vmem [resolvable:$true] %s226
          %232 = dma.hbm_to_vmem [thread:$0]  %s1, 512, %s227, [#allocation5], 128, 128, 8
        $region16: #{tpu_custom_call.1} parent=11 // pred_fallthru
          _
        // Predicated region
        $region17: #{tpu_custom_call.1} parent=11 // pred_check
          %p233 = pneg %p100
        $region18: #{tpu_custom_call.1} parent=11 // pred_check_branch
          %235 = sbr.rel (%p233) target = $region20
        $region19: #{tpu_custom_call.1} parent=11 // pred_region
          %s237 = ssub.s32 512, 512
          %238 = vsyncadd [#allocation5], %s237
          %s239 = sshll.u32 [#allocation6], 4
          %s240 = int_to_ptr.vmem [resolvable:$true] %s239
          %245 = dma.hbm_to_vmem [thread:$0]  %s2, 512, %s240, [#allocation5], 128, 128, 8
        $region20: #{tpu_custom_call.1} parent=11 // pred_fallthru
          _
        // Predicated region
        $region21: #{tpu_custom_call.1} parent=11 // pred_check
          %p246 = pneg %p121
        $region22: #{tpu_custom_call.1} parent=11 // pred_check_branch
          %248 = sbr.rel (%p246) target = $region24
        $region23: #{tpu_custom_call.1} parent=11 // pred_region
          %s250 = ssub.s32 512, 512
          %251 = vsyncadd [#allocation8], %s250
          %s252 = sshll.u32 [#allocation7], 4
          %s253 = int_to_ptr.vmem [resolvable:$true] %s252
          %258 = dma.hbm_to_vmem [thread:$0]  %s3, 512, %s253, [#allocation8], 128, 128, 8
        $region24: #{tpu_custom_call.1} parent=11 // pred_fallthru
          _
      $region12: #{tpu_custom_call.1} parent=5 // pred_fallthru
        _
      %p259 = scmp.lt.s32.totalorder %s18, 2
      // Predicated region
      $region25: #{tpu_custom_call.1} parent=5 // pred_check
        %p260 = pneg %p259
      $region26: #{tpu_custom_call.1} parent=5 // pred_check_branch
        %262 = sbr.rel (%p260) target = $region28
      $region27: #{tpu_custom_call.1} parent=5 // pred_region
        // Predicated region
        $region29: #{tpu_custom_call.1} parent=27 // pred_check
          %p263 = pneg %p52
        $region30: #{tpu_custom_call.1} parent=27 // pred_check_branch
          %265 = sbr.rel (%p263) target = $region32
        $region31: #{tpu_custom_call.1} parent=27 // pred_region
          %s266 = sand.u32 %s42, 1
          %s267 = scalar_lea.sflag [#allocation3], %s266
          %s268 = sand.u32 %s42, 1
          %s269 = smul.addr %s268, 8
          %s270 = scalar_lea.vmem [#allocation2], %s269
          %s272 = ssub.s32 128, 128
          %273 = vsyncadd %s267, %s272
          %s274 = sadd.s32 %s26, %s25
          %s275 = smul.addr %s274, 128
          %s276 = scalar_lea.hbm %s0, %s275
          %s278 = sshll.u32 %s270, 4
          %s279 = int_to_ptr.vmem [resolvable:$true] %s278
          %281 = dma.hbm_to_vmem [thread:$0]  %s276, 128, %s279, %s267
        $region32: #{tpu_custom_call.1} parent=27 // pred_fallthru
          _
      $region28: #{tpu_custom_call.1} parent=5 // pred_fallthru
        _
      %p282 = scmp.le.s32.totalorder 1, %s18
      %p283 = scmp.lt.s32.totalorder %s18, 3
      %p284 = pnand %p282, %p283
      %p285 = pneg %p284
      // Predicated region
      $region33: #{tpu_custom_call.1} parent=5 // pred_check
        _
      $region34: #{tpu_custom_call.1} parent=5 // pred_check_branch
        %287 = sbr.rel (%p284) target = $region36
      $region35: #{tpu_custom_call.1} parent=5 // pred_region
        %s288 = ssub.s32 %s18, 1
        %s289 = sand.u32 %s45, 1
        %s290 = scalar_lea.sflag [#allocation3], %s289
        %s291 = sand.u32 %s45, 1
        %s292 = smul.addr %s291, 8
        %s293 = scalar_lea.vmem [#allocation2], %s292
        // Predicated region
        $region37: #{tpu_custom_call.1} parent=35 // pred_check
          %p294 = pneg %p58
        $region38: #{tpu_custom_call.1} parent=35 // pred_check_branch
          %296 = sbr.rel (%p294) target = $region40
        $region39: #{tpu_custom_call.1} parent=35 // pred_region
          %297 = dma.done %s290, 128
        $region40: #{tpu_custom_call.1} parent=35 // pred_fallthru
          _
        // Predicated region
        $region41: #{tpu_custom_call.1} parent=35 // pred_check
          %p298 = pneg %p79
        $region42: #{tpu_custom_call.1} parent=35 // pred_check_branch
          %300 = sbr.rel (%p298) target = $region44
        $region43: #{tpu_custom_call.1} parent=35 // pred_region
          %301 = dma.done [#allocation5], 512
        $region44: #{tpu_custom_call.1} parent=35 // pred_fallthru
          _
        // Predicated region
        $region45: #{tpu_custom_call.1} parent=35 // pred_check
          %p302 = pneg %p100
        $region46: #{tpu_custom_call.1} parent=35 // pred_check_branch
          %304 = sbr.rel (%p302) target = $region48
        $region47: #{tpu_custom_call.1} parent=35 // pred_region
          %305 = dma.done [#allocation5], 512
        $region48: #{tpu_custom_call.1} parent=35 // pred_fallthru
          _
        // Predicated region
        $region49: #{tpu_custom_call.1} parent=35 // pred_check
          %p306 = pneg %p121
        $region50: #{tpu_custom_call.1} parent=35 // pred_check_branch
          %308 = sbr.rel (%p306) target = $region52
        $region51: #{tpu_custom_call.1} parent=35 // pred_region
          %309 = dma.done [#allocation8], 512
        $region52: #{tpu_custom_call.1} parent=35 // pred_fallthru
          _
        %s310 = sand.u32 %s45, 1
        %s311 = scalar_lea.sflag [#allocation3], %s310
        %s312 = sand.u32 %s45, 1
        %s313 = smul.addr %s312, 8
        %s314 = scalar_lea.vmem [#allocation2], %s313
        %p315 = pneg %p58
        %p316 = pneg %p55
        %p317 = pneg %p79
        %p318 = pneg %p76
        %p319 = pneg %p100
        %p320 = pneg %p97
        %p321 = pneg %p121
        %p322 = pneg %p118
        %p323 = pneg %p149
        %p324 = pneg %p146
        %p325 = scmp.lt.s32.totalorder %s27, 1
        %s326 = scalar_select %p325, %s27, 1
        %p327 = scmp.lt.s32.totalorder %s28, 0
        %s328 = scalar_select %p327, %s28, 0
        %s329 = smul.addr %s326, 8
        %s330 = sadd.s32 %s328, %s329
        %s331 = smul.addr %s330, 8
        %s332 = scalar_lea.vmem %s4, %s331
        %p333 = pneg %p177
        %p334 = pneg %p174
        %p335 = scmp.lt.s32.totalorder %s27, 1
        %s336 = scalar_select %p335, %s27, 1
        %p337 = scmp.lt.s32.totalorder %s28, 0
        %s338 = scalar_select %p337, %s28, 0
        %s339 = smul.addr %s336, 8
        %s340 = sadd.s32 %s338, %s339
        %s341 = smul.addr %s340, 8
        %s342 = scalar_lea.vmem %s5, %s341
        %p343 = pneg %p205
        %p344 = pneg %p202
        %p345 = scmp.lt.s32.totalorder %s27, 1
        %s346 = scalar_select %p345, %s27, 1
        %p347 = scmp.lt.s32.totalorder %s28, 0
        %s348 = scalar_select %p347, %s28, 0
        %s349 = smul.addr %s346, 8
        %s350 = sadd.s32 %s348, %s349
        %s351 = smul.addr %s350, 8
        %s352 = scalar_lea.vmem %s6, %s351
        %p353 = scmp.lt.s32.totalorder %s27, 1
        %s354 = scalar_select %p353, %s27, 1
        %p355 = scmp.lt.s32.totalorder %s28, 0
        %s356 = scalar_select %p355, %s28, 0
        %s357 = smul.addr %s354, 8
        %s358 = sadd.s32 %s356, %s357
        %s359 = smul.addr %s358, 8
        %s360 = scalar_lea.vmem %s4, %s359
        %p361 = scmp.lt.s32.totalorder %s27, 1
        %s362 = scalar_select %p361, %s27, 1
        %p363 = scmp.lt.s32.totalorder %s28, 0
        %s364 = scalar_select %p363, %s28, 0
        %s365 = smul.addr %s362, 8
        %s366 = sadd.s32 %s364, %s365
        %s367 = smul.addr %s366, 8
        %s368 = scalar_lea.vmem %s5, %s367
        %p369 = scmp.lt.s32.totalorder %s27, 1
        %s370 = scalar_select %p369, %s27, 1
        %p371 = scmp.lt.s32.totalorder %s28, 0
        %s372 = scalar_select %p371, %s28, 0
        %s373 = smul.addr %s370, 8
        %s374 = sadd.s32 %s372, %s373
        %s375 = smul.addr %s374, 8
        %s376 = scalar_lea.vmem %s6, %s375
        %v377 = vld [vmem:[%s293] sm:$0xff]
        %v378 = vld [vmem:[#allocation4] sm:$0xff]
        %v379 = vld [vmem:[#allocation4 + $0x8] sm:$0xff]
        %v380 = vld [vmem:[#allocation4 + $0x10] sm:$0xff]
        %v381 = vld [vmem:[#allocation4 + $0x18] sm:$0xff]
        %vm382 = vcmask 261120
        %v384 = vsel %vm382, %v377, 0
        %386 = vmatprep.subr.mxu0 0.0
        %387 = vmatpush1.msra.mxu0 %v378
        %388 = vmatprep.subr.mxu0 0.0
        %389 = vmatpush1.msra.mxu0 %v379
        %390 = vmatprep.subr.mxu0 0.0
        %391 = vmatpush1.msra.mxu0 %v380
        %392 = vmatprep.subr.mxu0 0.0
        %393 = vmatpush1.msra.mxu0 %v381
        %394 = vmatprep.subr.mxu0 0.0
        %395 = vmatpush1.msra.mxu0 0.0
        %396 = vmatprep.subr.mxu0 0.0
        %397 = vmatpush1.msra.mxu0 0.0
        %398 = vmatprep.subr.mxu0 0.0
        %399 = vmatpush1.msra.mxu0 0.0
        %400 = vmatprep.subr.mxu0 0.0
        %401 = vmatpush1.msra.mxu0 0.0
        %402 = vmatprep.subr.mxu0 0.0
        %403 = vmatpush1.msra.mxu0 0.0
        %404 = vmatprep.subr.mxu0 0.0
        %405 = vmatpush1.msra.mxu0 0.0
        %406 = vmatprep.subr.mxu0 0.0
        %407 = vmatpush1.msra.mxu0 0.0
        %408 = vmatprep.subr.mxu0 0.0
        %409 = vmatpush1.msra.mxu0 0.0
        %410 = vmatprep.subr.mxu0 0.0
        %411 = vmatpush1.msra.mxu0 0.0
        %412 = vmatprep.subr.mxu0 0.0
        %413 = vmatpush1.msra.mxu0 0.0
        %414 = vmatprep.subr.mxu0 0.0
        %415 = vmatpush1.msra.mxu0 0.0
        %416 = vmatprep.subr.mxu0 0.0
        %417 = vmatpush1.msra.mxu0 0.0
        %418 = vmatprep.subr.mxu0 0.0
        %419 = vmatpush1.msra.mxu0 0.0
        %420 = vmatprep.subr.mxu0 0.0
        %421 = vmatpush1.msra.mxu0 0.0
        %422 = vmatprep.subr.mxu0 0.0
        %423 = vmatpush1.msra.mxu0 0.0
        %424 = vmatprep.subr.mxu0 0.0
        %425 = vmatpush1.msra.mxu0 0.0
        %426 = vmatprep.subr.mxu0 0.0
        %427 = vmatpush1.msra.mxu0 0.0
        %428 = vmatprep.subr.mxu0 0.0
        %429 = vmatpush1.msra.mxu0 0.0
        %430 = vmatprep.subr.mxu0 0.0
        %431 = vmatpush1.msra.mxu0 0.0
        %432 = vmatprep.subr.mxu0 0.0
        %433 = vmatpush1.msra.mxu0 0.0
        %434 = vmatprep.subr.mxu0 0.0
        %435 = vmatpush1.msra.mxu0 0.0
        %436 = vmatprep.subr.mxu0 0.0
        %437 = vmatpush1.msra.mxu0 0.0
        %438 = vmatprep.subr.mxu0 0.0
        %439 = vmatpush1.msra.mxu0 0.0
        %440 = vmatprep.subr.mxu0 0.0
        %441 = vmatpush1.msra.mxu0 0.0
        %442 = vmatprep.subr.mxu0 0.0
        %443 = vmatpush1.msra.mxu0 0.0
        %444 = vmatprep.subr.mxu0 0.0
        %445 = vmatpush1.msra.mxu0 0.0
        %446 = vmatprep.subr.mxu0 0.0
        %447 = vmatpush1.msra.mxu0 0.0
        %448 = vmatprep.subr.mxu0 0.0
        %449 = vmatpush1.msra.mxu0 0.0
        %450 = vmatprep.mubr.f32.mxu0 0.0
        %451 = vmatmul.mubr.f32.gmra.mrb[0].mxu0 %v384
        %v452 = vpop.f32.mrb[0].mxu0
        %v453 = vadd.f32 0.0, %v452
        %v454 = vpop.f32.mrb[0].mxu0
        %455 = vdwg.mxu0
        %v456 = vmul.f32 %v453, 0.5
        %v457 = vld [vmem:[#allocation6] sm:$0xff]
        %v458 = vld [vmem:[#allocation6 + $0x8] sm:$0xff]
        %v459 = vld [vmem:[#allocation6 + $0x10] sm:$0xff]
        %v460 = vld [vmem:[#allocation6 + $0x18] sm:$0xff]
        %461 = vmatprep.subr.mxu0 0.0
        %462 = vmatpush1.msra.mxu0 %v457
        %463 = vmatprep.subr.mxu0 0.0
        %464 = vmatpush1.msra.mxu0 %v458
        %465 = vmatprep.subr.mxu0 0.0
        %466 = vmatpush1.msra.mxu0 %v459
        %467 = vmatprep.subr.mxu0 0.0
        %468 = vmatpush1.msra.mxu0 %v460
        %469 = vmatprep.subr.mxu0 0.0
        %470 = vmatpush1.msra.mxu0 0.0
        %471 = vmatprep.subr.mxu0 0.0
        %472 = vmatpush1.msra.mxu0 0.0
        %473 = vmatprep.subr.mxu0 0.0
        %474 = vmatpush1.msra.mxu0 0.0
        %475 = vmatprep.subr.mxu0 0.0
        %476 = vmatpush1.msra.mxu0 0.0
        %477 = vmatprep.subr.mxu0 0.0
        %478 = vmatpush1.msra.mxu0 0.0
        %479 = vmatprep.subr.mxu0 0.0
        %480 = vmatpush1.msra.mxu0 0.0
        %481 = vmatprep.subr.mxu0 0.0
        %482 = vmatpush1.msra.mxu0 0.0
        %483 = vmatprep.subr.mxu0 0.0
        %484 = vmatpush1.msra.mxu0 0.0
        %485 = vmatprep.subr.mxu0 0.0
        %486 = vmatpush1.msra.mxu0 0.0
        %487 = vmatprep.subr.mxu0 0.0
        %488 = vmatpush1.msra.mxu0 0.0
        %489 = vmatprep.subr.mxu0 0.0
        %490 = vmatpush1.msra.mxu0 0.0
        %491 = vmatprep.subr.mxu0 0.0
        %492 = vmatpush1.msra.mxu0 0.0
        %493 = vmatprep.subr.mxu0 0.0
        %494 = vmatpush1.msra.mxu0 0.0
        %495 = vmatprep.subr.mxu0 0.0
        %496 = vmatpush1.msra.mxu0 0.0
        %497 = vmatprep.subr.mxu0 0.0
        %498 = vmatpush1.msra.mxu0 0.0
        %499 = vmatprep.subr.mxu0 0.0
        %500 = vmatpush1.msra.mxu0 0.0
        %501 = vmatprep.subr.mxu0 0.0
        %502 = vmatpush1.msra.mxu0 0.0
        %503 = vmatprep.subr.mxu0 0.0
        %504 = vmatpush1.msra.mxu0 0.0
        %505 = vmatprep.subr.mxu0 0.0
        %506 = vmatpush1.msra.mxu0 0.0
        %507 = vmatprep.subr.mxu0 0.0
        %508 = vmatpush1.msra.mxu0 0.0
        %509 = vmatprep.subr.mxu0 0.0
        %510 = vmatpush1.msra.mxu0 0.0
        %511 = vmatprep.subr.mxu0 0.0
        %512 = vmatpush1.msra.mxu0 0.0
        %513 = vmatprep.subr.mxu0 0.0
        %514 = vmatpush1.msra.mxu0 0.0
        %515 = vmatprep.subr.mxu0 0.0
        %516 = vmatpush1.msra.mxu0 0.0
        %517 = vmatprep.subr.mxu0 0.0
        %518 = vmatpush1.msra.mxu0 0.0
        %519 = vmatprep.subr.mxu0 0.0
        %520 = vmatpush1.msra.mxu0 0.0
        %521 = vmatprep.subr.mxu0 0.0
        %522 = vmatpush1.msra.mxu0 0.0
        %523 = vmatprep.subr.mxu0 0.0
        %524 = vmatpush1.msra.mxu0 0.0
        %525 = vmatprep.mubr.f32.mxu0 0.0
        %526 = vmatmul.mubr.f32.gmra.mrb[0].mxu0 %v384
        %v527 = vpop.f32.mrb[0].mxu0
        %v528 = vadd.f32 0.0, %v527
        %v529 = vpop.f32.mrb[0].mxu0
        %530 = vdwg.mxu0
        %v531 = vld [vmem:[#allocation7] sm:$0xff]
        %v532 = vld [vmem:[#allocation7 + $0x8] sm:$0xff]
        %v533 = vld [vmem:[#allocation7 + $0x10] sm:$0xff]
        %v534 = vld [vmem:[#allocation7 + $0x18] sm:$0xff]
        %535 = vmatprep.subr.mxu0 0.0
        %536 = vmatpush1.msra.mxu0 %v531
        %537 = vmatprep.subr.mxu0 0.0
        %538 = vmatpush1.msra.mxu0 %v532
        %539 = vmatprep.subr.mxu0 0.0
        %540 = vmatpush1.msra.mxu0 %v533
        %541 = vmatprep.subr.mxu0 0.0
        %542 = vmatpush1.msra.mxu0 %v534
        %543 = vmatprep.subr.mxu0 0.0
        %544 = vmatpush1.msra.mxu0 0.0
        %545 = vmatprep.subr.mxu0 0.0
        %546 = vmatpush1.msra.mxu0 0.0
        %547 = vmatprep.subr.mxu0 0.0
        %548 = vmatpush1.msra.mxu0 0.0
        %549 = vmatprep.subr.mxu0 0.0
        %550 = vmatpush1.msra.mxu0 0.0
        %551 = vmatprep.subr.mxu0 0.0
        %552 = vmatpush1.msra.mxu0 0.0
        %553 = vmatprep.subr.mxu0 0.0
        %554 = vmatpush1.msra.mxu0 0.0
        %555 = vmatprep.subr.mxu0 0.0
        %556 = vmatpush1.msra.mxu0 0.0
        %557 = vmatprep.subr.mxu0 0.0
        %558 = vmatpush1.msra.mxu0 0.0
        %559 = vmatprep.subr.mxu0 0.0
        %560 = vmatpush1.msra.mxu0 0.0
        %561 = vmatprep.subr.mxu0 0.0
        %562 = vmatpush1.msra.mxu0 0.0
        %563 = vmatprep.subr.mxu0 0.0
        %564 = vmatpush1.msra.mxu0 0.0
        %565 = vmatprep.subr.mxu0 0.0
        %566 = vmatpush1.msra.mxu0 0.0
        %567 = vmatprep.subr.mxu0 0.0
        %568 = vmatpush1.msra.mxu0 0.0
        %569 = vmatprep.subr.mxu0 0.0
        %570 = vmatpush1.msra.mxu0 0.0
        %571 = vmatprep.subr.mxu0 0.0
        %572 = vmatpush1.msra.mxu0 0.0
        %573 = vmatprep.subr.mxu0 0.0
        %574 = vmatpush1.msra.mxu0 0.0
        %575 = vmatprep.subr.mxu0 0.0
        %576 = vmatpush1.msra.mxu0 0.0
        %577 = vmatprep.subr.mxu0 0.0
        %578 = vmatpush1.msra.mxu0 0.0
        %579 = vmatprep.subr.mxu0 0.0
        %580 = vmatpush1.msra.mxu0 0.0
        %581 = vmatprep.subr.mxu0 0.0
        %582 = vmatpush1.msra.mxu0 0.0
        %583 = vmatprep.subr.mxu0 0.0
        %584 = vmatpush1.msra.mxu0 0.0
        %585 = vmatprep.subr.mxu0 0.0
        %586 = vmatpush1.msra.mxu0 0.0
        %587 = vmatprep.subr.mxu0 0.0
        %588 = vmatpush1.msra.mxu0 0.0
        %589 = vmatprep.subr.mxu0 0.0
        %590 = vmatpush1.msra.mxu0 0.0
        %591 = vmatprep.subr.mxu0 0.0
        %592 = vmatpush1.msra.mxu0 0.0
        %593 = vmatprep.subr.mxu0 0.0
        %594 = vmatpush1.msra.mxu0 0.0
        %595 = vmatprep.subr.mxu0 0.0
        %596 = vmatpush1.msra.mxu0 0.0
        %597 = vmatprep.subr.mxu0 0.0
        %598 = vmatpush1.msra.mxu0 0.0
        %599 = vmatprep.mubr.f32.mxu0 0.0
        %600 = vmatmul.mubr.f32.gmra.mrb[0].mxu0 %v384
        %v601 = vpop.f32.mrb[0].mxu0
        %v602 = vadd.f32 0.0, %v601
        %v603 = vpop.f32.mrb[0].mxu0
        %604 = vdwg.mxu0
        %606 = vrot.lane.b32.xlu0 %v456, 124
        %v607 = vpop.permute.xlu0 %606
        %609 = vrot.lane.b32.xlu0 %v456, 120
        %v610 = vpop.permute.xlu0 %609
        %612 = vrot.lane.b32.xlu0 %v456, 116
        %v613 = vpop.permute.xlu0 %612
        %615 = vrot.lane.b32.xlu0 %v456, 112
        %v616 = vpop.permute.xlu0 %615
        %618 = vrot.lane.b32.xlu0 %v456, 108
        %v619 = vpop.permute.xlu0 %618
        %621 = vrot.lane.b32.xlu0 %v456, 104
        %v622 = vpop.permute.xlu0 %621
        %624 = vrot.lane.b32.xlu0 %v456, 100
        %v625 = vpop.permute.xlu0 %624
        %vm627 = vcmask 31744
        %628 = vst.msk [vmem:[%s360] sm:$0xff] %vm627, %v456
        %629 = vst.msk [vmem:[%s360 + $0x8] sm:$0xff] %vm627, %v607
        %630 = vst.msk [vmem:[%s360 + $0x10] sm:$0xff] %vm627, %v610
        %631 = vst.msk [vmem:[%s360 + $0x18] sm:$0xff] %vm627, %v613
        %632 = vst.msk [vmem:[%s360 + $0x20] sm:$0xff] %vm627, %v616
        %633 = vst.msk [vmem:[%s360 + $0x28] sm:$0xff] %vm627, %v619
        %634 = vst.msk [vmem:[%s360 + $0x30] sm:$0xff] %vm627, %v622
        %635 = vst.msk [vmem:[%s360 + $0x38] sm:$0xff] %vm627, %v625
        %637 = vrot.lane.b32.xlu0 %v528, 124
        %v638 = vpop.permute.xlu0 %637
        %640 = vrot.lane.b32.xlu0 %v528, 120
        %v641 = vpop.permute.xlu0 %640
        %643 = vrot.lane.b32.xlu0 %v528, 116
        %v644 = vpop.permute.xlu0 %643
        %646 = vrot.lane.b32.xlu0 %v528, 112
        %v647 = vpop.permute.xlu0 %646
        %649 = vrot.lane.b32.xlu0 %v528, 108
        %v650 = vpop.permute.xlu0 %649
        %652 = vrot.lane.b32.xlu0 %v528, 104
        %v653 = vpop.permute.xlu0 %652
        %655 = vrot.lane.b32.xlu0 %v528, 100
        %v656 = vpop.permute.xlu0 %655
        %658 = vst.msk [vmem:[%s368] sm:$0xff] %vm627, %v528
        %659 = vst.msk [vmem:[%s368 + $0x8] sm:$0xff] %vm627, %v638
        %660 = vst.msk [vmem:[%s368 + $0x10] sm:$0xff] %vm627, %v641
        %661 = vst.msk [vmem:[%s368 + $0x18] sm:$0xff] %vm627, %v644
        %662 = vst.msk [vmem:[%s368 + $0x20] sm:$0xff] %vm627, %v647
        %663 = vst.msk [vmem:[%s368 + $0x28] sm:$0xff] %vm627, %v650
        %664 = vst.msk [vmem:[%s368 + $0x30] sm:$0xff] %vm627, %v653
        %665 = vst.msk [vmem:[%s368 + $0x38] sm:$0xff] %vm627, %v656
        %667 = vrot.lane.b32.xlu0 %v602, 124
        %v668 = vpop.permute.xlu0 %667
        %670 = vrot.lane.b32.xlu0 %v602, 120
        %v671 = vpop.permute.xlu0 %670
        %673 = vrot.lane.b32.xlu0 %v602, 116
        %v674 = vpop.permute.xlu0 %673
        %676 = vrot.lane.b32.xlu0 %v602, 112
        %v677 = vpop.permute.xlu0 %676
        %679 = vrot.lane.b32.xlu0 %v602, 108
        %v680 = vpop.permute.xlu0 %679
        %682 = vrot.lane.b32.xlu0 %v602, 104
        %v683 = vpop.permute.xlu0 %682
        %685 = vrot.lane.b32.xlu0 %v602, 100
        %v686 = vpop.permute.xlu0 %685
        %688 = vst.msk [vmem:[%s376] sm:$0xff] %vm627, %v602
        %689 = vst.msk [vmem:[%s376 + $0x8] sm:$0xff] %vm627, %v668
        %690 = vst.msk [vmem:[%s376 + $0x10] sm:$0xff] %vm627, %v671
        %691 = vst.msk [vmem:[%s376 + $0x18] sm:$0xff] %vm627, %v674
        %692 = vst.msk [vmem:[%s376 + $0x20] sm:$0xff] %vm627, %v677
        %693 = vst.msk [vmem:[%s376 + $0x28] sm:$0xff] %vm627, %v680
        %694 = vst.msk [vmem:[%s376 + $0x30] sm:$0xff] %vm627, %v683
        %695 = vst.msk [vmem:[%s376 + $0x38] sm:$0xff] %vm627, %v686
        %p696 = scmp.lt.s32.totalorder %s27, 1
        %s697 = scalar_select %p696, %s27, 1
        %p698 = scmp.lt.s32.totalorder %s28, 0
        %s699 = scalar_select %p698, %s28, 0
        %s700 = smul.addr %s697, 8
        %s701 = sadd.s32 %s699, %s700
        %s702 = smul.addr %s701, 8
        %s703 = scalar_lea.vmem %s4, %s702
        %p704 = scmp.lt.s32.totalorder %s27, 1
        %s705 = scalar_select %p704, %s27, 1
        %p706 = scmp.lt.s32.totalorder %s28, 0
        %s707 = scalar_select %p706, %s28, 0
        %s708 = smul.addr %s705, 8
        %s709 = sadd.s32 %s707, %s708
        %s710 = smul.addr %s709, 8
        %s711 = scalar_lea.vmem %s5, %s710
        %p712 = scmp.lt.s32.totalorder %s27, 1
        %s713 = scalar_select %p712, %s27, 1
        %p714 = scmp.lt.s32.totalorder %s28, 0
        %s715 = scalar_select %p714, %s28, 0
        %s716 = smul.addr %s713, 8
        %s717 = sadd.s32 %s715, %s716
        %s718 = smul.addr %s717, 8
        %s719 = scalar_lea.vmem %s6, %s718
        // Predicated region
        $region53: #{tpu_custom_call.1} parent=35 // pred_check
          %p720 = pneg %p146
        $region54: #{tpu_custom_call.1} parent=35 // pred_check_branch
          %722 = sbr.rel (%p720) target = $region56
        $region55: #{tpu_custom_call.1} parent=35 // pred_region
          _
        $region56: #{tpu_custom_call.1} parent=35 // pred_fallthru
          _
        // Predicated region
        $region57: #{tpu_custom_call.1} parent=35 // pred_check
          %p723 = pneg %p174
        $region58: #{tpu_custom_call.1} parent=35 // pred_check_branch
          %725 = sbr.rel (%p723) target = $region60
        $region59: #{tpu_custom_call.1} parent=35 // pred_region
          _
        $region60: #{tpu_custom_call.1} parent=35 // pred_fallthru
          _
        // Predicated region
        $region61: #{tpu_custom_call.1} parent=35 // pred_check
          %p726 = pneg %p202
        $region62: #{tpu_custom_call.1} parent=35 // pred_check_branch
          %728 = sbr.rel (%p726) target = $region64
        $region63: #{tpu_custom_call.1} parent=35 // pred_region
          _
        $region64: #{tpu_custom_call.1} parent=35 // pred_fallthru
          _
      $region36: #{tpu_custom_call.1} parent=5 // pred_fallthru
        _
      %p729 = scmp.le.s32.totalorder 2, %s18
      // Predicated region
      $region65: #{tpu_custom_call.1} parent=5 // pred_check
        %p730 = pneg %p729
      $region66: #{tpu_custom_call.1} parent=5 // pred_check_branch
        %732 = sbr.rel (%p730) target = $region68
      $region67: #{tpu_custom_call.1} parent=5 // pred_region
        %s733 = ssub.s32 %s18, 2
        // Predicated region
        $region69: #{tpu_custom_call.1} parent=67 // pred_check
          %p734 = pneg %p152
        $region70: #{tpu_custom_call.1} parent=67 // pred_check_branch
          %736 = sbr.rel (%p734) target = $region72
        $region71: #{tpu_custom_call.1} parent=67 // pred_region
          %p737 = scmp.lt.s32.totalorder %s29, 1
          %s738 = scalar_select %p737, %s29, 1
          %p739 = scmp.lt.s32.totalorder %s30, 0
          %s740 = scalar_select %p739, %s30, 0
          %s741 = smul.addr %s738, 8
          %s742 = sadd.s32 %s740, %s741
          %s743 = smul.addr %s742, 8
          %s744 = scalar_lea.vmem %s4, %s743
        $region72: #{tpu_custom_call.1} parent=67 // pred_fallthru
          _
        // Predicated region
        $region73: #{tpu_custom_call.1} parent=67 // pred_check
          %p745 = pneg %p180
        $region74: #{tpu_custom_call.1} parent=67 // pred_check_branch
          %747 = sbr.rel (%p745) target = $region76
        $region75: #{tpu_custom_call.1} parent=67 // pred_region
          %p748 = scmp.lt.s32.totalorder %s29, 1
          %s749 = scalar_select %p748, %s29, 1
          %p750 = scmp.lt.s32.totalorder %s30, 0
          %s751 = scalar_select %p750, %s30, 0
          %s752 = smul.addr %s749, 8
          %s753 = sadd.s32 %s751, %s752
          %s754 = smul.addr %s753, 8
          %s755 = scalar_lea.vmem %s5, %s754
        $region76: #{tpu_custom_call.1} parent=67 // pred_fallthru
          _
        // Predicated region
        $region77: #{tpu_custom_call.1} parent=67 // pred_check
          %p756 = pneg %p208
        $region78: #{tpu_custom_call.1} parent=67 // pred_check_branch
          %758 = sbr.rel (%p756) target = $region80
        $region79: #{tpu_custom_call.1} parent=67 // pred_region
          %p759 = scmp.lt.s32.totalorder %s29, 1
          %s760 = scalar_select %p759, %s29, 1
          %p761 = scmp.lt.s32.totalorder %s30, 0
          %s762 = scalar_select %p761, %s30, 0
          %s763 = smul.addr %s760, 8
          %s764 = sadd.s32 %s762, %s763
          %s765 = smul.addr %s764, 8
          %s766 = scalar_lea.vmem %s6, %s765
        $region80: #{tpu_custom_call.1} parent=67 // pred_fallthru
          _
      $region68: #{tpu_custom_call.1} parent=5 // pred_fallthru
        _
    $region6: #{tpu_custom_call.1} parent=1 // loop_footer
      %s22 = sadd.s32 1, %s18
    $region7: #{tpu_custom_call.1} parent=1 // loop_footer_branch
      %17 = sbr.rel target = $region3
    $region8: #{tpu_custom_call.1} parent=1 // loop_exit
      _
    %767 = vsyncpa [#allocation3], 1
    %s768 = scalar_lea.sflag [#allocation3], 1
    %769 = vsyncpa %s768, 1
    %770 = vsyncpa [#allocation5], 1
    %771 = vsyncpa [#allocation8], 1

</llo_original>
